<compile_context>
chip_gen: v5e
topology: v5e:2x2
jax: 0.10.0
libtpu: 0.0.40
codegen_flags: <defaults>
</compile_context>

<pallas_src>
import math

import numpy as np
import jax
import jax.numpy as jnp
from jax.experimental import pallas as pl
from jax.experimental.pallas import tpu as pltpu


def _norm_cdf(x):
    return 0.5 * (1.0 + math.erf(x / math.sqrt(2.0)))


def _gauss1d(kernlen=7, nsig=3):
    """1D factor k1 of the reference gkern(): gkern(kernlen) == outer(k1, k1).

    gkern = sqrt(outer(d, d)) / sum = outer(sqrt(d), sqrt(d)) / (sum sqrt(d))^2,
    so k1 = sqrt(d) / sum(sqrt(d)) reproduces the 2D kernel exactly.
    """
    interval = (2 * nsig + 1.0) / kernlen
    x = np.linspace(-nsig - interval / 2.0, nsig + interval / 2.0, kernlen + 1)
    cdf = np.array([_norm_cdf(v) for v in x], dtype=np.float64)
    kern1d = np.diff(cdf)
    s = np.sqrt(kern1d)
    return s / s.sum()


def _band_matrix(n, k1):
    """(n, n) matrix B such that (x @ B)[..., j] is the 7-tap correlation of x
    along its last axis at position j, with replicate ('edge') boundary
    handling baked into the band weights (no explicit padding needed)."""
    r = (len(k1) - 1) // 2
    B = np.zeros((n, n), np.float64)
    for j in range(n):                      # output position
        for d in range(-r, r + 1):
            i = min(max(j + d, 0), n - 1)   # clamped input pos == replicate pad
            B[i, j] += k1[d + r]
    return B.astype(np.float32)


def _softiou_stats_kernel(pred_ref, tgt_ref, ah_ref, bw_ref, out_ref):
    pred = pred_ref[0]                      # (H, W) f32, one image
    tgt = tgt_ref[0]                        # (H, W) f32

    # Separable 7x7 Gaussian cross-correlation with replicate padding,
    # expressed as two small matmuls on the MXU: conv = A_h @ pred @ B_w.
    conv = jnp.dot(ah_ref[...], pred, preferred_element_type=jnp.float32)
    conv = jnp.dot(conv, bw_ref[...], preferred_element_type=jnp.float32)

    mask = (tgt == 1.0).astype(jnp.float32)         # target == 1 (as in reference)

    # Per-image global reductions, finished fully in-kernel -> (1, 1) each.
    sp = jnp.sum(pred, keepdims=True)               # sum(pred)
    st = jnp.sum(tgt, keepdims=True)                # sum(target)
    tp = jnp.sum(conv * mask, keepdims=True)        # sum(conv[target == 1])
    ct = jnp.sum(mask, keepdims=True)               # count(target == 1)
    mn = jnp.min(conv, keepdims=True)               # min(conv)
    mx = jnp.max(conv, keepdims=True)               # max(conv)

    # Pack the six scalars into a single lane-dense (1, 128) row (lanes 0..5).
    lane = jax.lax.broadcasted_iota(jnp.int32, (1, 128), 1)
    row = jnp.where(lane == 0, sp, 0.0)
    row = jnp.where(lane == 1, st, row)
    row = jnp.where(lane == 2, tp, row)
    row = jnp.where(lane == 3, ct, row)
    row = jnp.where(lane == 4, mn, row)
    row = jnp.where(lane == 5, mx, row)
    out_ref[0] = row


def soft_iou(pred_nchw, target_nchw):
    assert pred_nchw.shape[1] == 1 and target_nchw.shape[1] == 1
    n, _, h, w = pred_nchw.shape
    pred = pred_nchw[:, 0].astype(jnp.float32)       # (N, H, W)
    target = target_nchw[:, 0].astype(jnp.float32)   # (N, H, W)

    # Trace-time constants: separable Gaussian folded into banded matrices.
    k1 = _gauss1d(7)
    a_h = jnp.asarray(_band_matrix(h, k1).T)         # (H, H), left-applied (rows)
    b_w = jnp.asarray(_band_matrix(w, k1))           # (W, W), right-applied (cols)

    stats = pl.pallas_call(
        _softiou_stats_kernel,
        out_shape=jax.ShapeDtypeStruct((n, 1, 128), jnp.float32),
        grid=(n,),
        in_specs=[
            pl.BlockSpec((1, h, w), lambda i: (i, 0, 0)),   # pred: one image/step
            pl.BlockSpec((1, h, w), lambda i: (i, 0, 0)),   # target
            pl.BlockSpec((h, h), lambda i: (0, 0)),         # A_h (broadcast)
            pl.BlockSpec((w, w), lambda i: (0, 0)),         # B_w (broadcast)
        ],
        out_specs=pl.BlockSpec((1, 1, 128), lambda i: (i, 0, 0)),
        compiler_params=pltpu.CompilerParams(
            dimension_semantics=("parallel",)),             # megacore split on v7x
    )(pred, target, a_h, b_w)

    # Finish the tiny batch reduction on the per-image stats (scalar glue).
    sum_pred = jnp.sum(stats[:, 0, 0])
    sum_tgt = jnp.sum(stats[:, 0, 1])
    tp_raw = jnp.sum(stats[:, 0, 2])
    cnt = jnp.sum(stats[:, 0, 3])
    c_min = jnp.min(stats[:, 0, 4])
    c_max = jnp.max(stats[:, 0, 5])

    # pred_soft = (conv - min) / (max - min);  TP = sum(pred_soft[target == 1]).
    # Degenerate inputs (constant conv map, all-zero target) yield NaN/Inf,
    # exactly matching the PyTorch reference's behavior.
    tp = (tp_raw - c_min * cnt) / (c_max - c_min)
    precise = tp / sum_pred
    recall = tp / sum_tgt
    fmeasure = 2.0 * (precise * recall) / (precise + recall)

    # if sum(pred) <= 0: return zeros(1)
    return jnp.where(sum_pred <= 0.0, 0.0, fmeasure).reshape(1)


if __name__ == "__main__":
    key = jax.random.PRNGKey(0)
    ka, kb = jax.random.split(key)
    pred = jax.random.uniform(ka, (2, 1, 16, 16), dtype=jnp.float32)
    target = (jax.random.uniform(kb, (2, 1, 16, 16)) > 0.5).astype(jnp.float32)

    out = jax.jit(soft_iou)(pred, target)
    jax.block_until_ready(out)
    print("KERNEL_OK")
</pallas_src>

<mosaic_0001>
module attributes {stable_mosaic.version = 11 : i64} {
  func.func @_softiou_stats_kernel(%arg0: i32, %arg1: memref<1x16x16xf32, #tpu.memory_space<vmem>>, %arg2: memref<1x16x16xf32, #tpu.memory_space<vmem>>, %arg3: memref<16x16xf32, #tpu.memory_space<vmem>>, %arg4: memref<16x16xf32, #tpu.memory_space<vmem>>, %arg5: memref<1x1x128xf32, #tpu.memory_space<vmem>>) attributes {dimension_semantics = [#tpu.dimension_semantics<parallel>], iteration_bounds = array<i64: 2>, scalar_prefetch = 0 : i64, scratch_operands = 0 : i64, tpu.core_type = #tpu.core_type<tc>, window_params = [{transform_indices = @transform_0, window_bounds = array<i64: 1, 16, 16>}, {transform_indices = @transform_1, window_bounds = array<i64: 1, 16, 16>}, {pipeline_mode = #tpu.pipeline_mode<synchronous>, transform_indices = @transform_2, window_bounds = array<i64: 16, 16>}, {pipeline_mode = #tpu.pipeline_mode<synchronous>, transform_indices = @transform_3, window_bounds = array<i64: 16, 16>}, {transform_indices = @transform_4, window_bounds = array<i64: 1, 1, 128>}]} {
    %c0 = arith.constant 0 : index
    %c0_0 = arith.constant 0 : index
    %c0_1 = arith.constant 0 : index
    %0 = vector.load %arg1[%c0, %c0_0, %c0_1] : memref<1x16x16xf32, #tpu.memory_space<vmem>>, vector<1x16x16xf32>
    %1 = vector.shape_cast %0 : vector<1x16x16xf32> to vector<16x16xf32>
    %c0_2 = arith.constant 0 : index
    %c0_3 = arith.constant 0 : index
    %c0_4 = arith.constant 0 : index
    %2 = vector.load %arg2[%c0_2, %c0_3, %c0_4] : memref<1x16x16xf32, #tpu.memory_space<vmem>>, vector<1x16x16xf32>
    %3 = vector.shape_cast %2 : vector<1x16x16xf32> to vector<16x16xf32>
    %c0_5 = arith.constant 0 : index
    %c0_6 = arith.constant 0 : index
    %4 = vector.load %arg3[%c0_5, %c0_6] : memref<16x16xf32, #tpu.memory_space<vmem>>, vector<16x16xf32>
    %cst = arith.constant dense<0.000000e+00> : vector<16x16xf32>
    %5 = tpu.matmul %4, %1, %cst {dimension_numbers = #tpu.dot_dimension_numbers<[1], [0], [0], [1], [0, 0, 1, 1], [], []>} : vector<16x16xf32>, vector<16x16xf32>, vector<16x16xf32> -> vector<16x16xf32>
    %c0_7 = arith.constant 0 : index
    %c0_8 = arith.constant 0 : index
    %6 = vector.load %arg4[%c0_7, %c0_8] : memref<16x16xf32, #tpu.memory_space<vmem>>, vector<16x16xf32>
    %cst_9 = arith.constant dense<0.000000e+00> : vector<16x16xf32>
    %7 = tpu.matmul %5, %6, %cst_9 {dimension_numbers = #tpu.dot_dimension_numbers<[1], [0], [0], [1], [0, 0, 1, 1], [], []>} : vector<16x16xf32>, vector<16x16xf32>, vector<16x16xf32> -> vector<16x16xf32>
    %cst_10 = arith.constant 1.000000e+00 : f32
    %8 = vector.broadcast %cst_10 : f32 to vector<16x16xf32>
    %9 = arith.cmpf oeq, %3, %8 : vector<16x16xf32>
    %10 = arith.extui %9 : vector<16x16xi1> to vector<16x16xi32>
    %11 = arith.sitofp %10 : vector<16x16xi32> to vector<16x16xf32>
    %12 = vector.shape_cast %1 : vector<16x16xf32> to vector<1x16x16xf32>
    %cst_11 = arith.constant dense<0.000000e+00> : vector<1xf32>
    %13 = vector.multi_reduction <add>, %12, %cst_11 [1, 2] : vector<1x16x16xf32> to vector<1xf32>
    %14 = vector.shape_cast %13 : vector<1xf32> to vector<1x1x1xf32>
    %15 = vector.extract %14[0, 0, 0] : f32 from vector<1x1x1xf32>
    %16 = vector.broadcast %15 : f32 to vector<1x1xf32>
    %17 = vector.shape_cast %3 : vector<16x16xf32> to vector<1x16x16xf32>
    %cst_12 = arith.constant dense<0.000000e+00> : vector<1xf32>
    %18 = vector.multi_reduction <add>, %17, %cst_12 [1, 2] : vector<1x16x16xf32> to vector<1xf32>
    %19 = vector.shape_cast %18 : vector<1xf32> to vector<1x1x1xf32>
    %20 = vector.extract %19[0, 0, 0] : f32 from vector<1x1x1xf32>
    %21 = vector.broadcast %20 : f32 to vector<1x1xf32>
    %22 = arith.mulf %7, %11 : vector<16x16xf32>
    %23 = vector.shape_cast %22 : vector<16x16xf32> to vector<1x16x16xf32>
    %cst_13 = arith.constant dense<0.000000e+00> : vector<1xf32>
    %24 = vector.multi_reduction <add>, %23, %cst_13 [1, 2] : vector<1x16x16xf32> to vector<1xf32>
    %25 = vector.shape_cast %24 : vector<1xf32> to vector<1x1x1xf32>
    %26 = vector.extract %25[0, 0, 0] : f32 from vector<1x1x1xf32>
    %27 = vector.broadcast %26 : f32 to vector<1x1xf32>
    %28 = vector.shape_cast %11 : vector<16x16xf32> to vector<1x16x16xf32>
    %cst_14 = arith.constant dense<0.000000e+00> : vector<1xf32>
    %29 = vector.multi_reduction <add>, %28, %cst_14 [1, 2] : vector<1x16x16xf32> to vector<1xf32>
    %30 = vector.shape_cast %29 : vector<1xf32> to vector<1x1x1xf32>
    %31 = vector.extract %30[0, 0, 0] : f32 from vector<1x1x1xf32>
    %32 = vector.broadcast %31 : f32 to vector<1x1xf32>
    %33 = vector.shape_cast %7 : vector<16x16xf32> to vector<1x16x16xf32>
    %cst_15 = arith.constant dense<0x7F800000> : vector<1xf32>
    %34 = vector.multi_reduction <minimumf>, %33, %cst_15 [1, 2] : vector<1x16x16xf32> to vector<1xf32>
    %35 = vector.shape_cast %34 : vector<1xf32> to vector<1x1x1xf32>
    %36 = vector.extract %35[0, 0, 0] : f32 from vector<1x1x1xf32>
    %37 = vector.broadcast %36 : f32 to vector<1x1xf32>
    %38 = vector.shape_cast %7 : vector<16x16xf32> to vector<1x16x16xf32>
    %cst_16 = arith.constant dense<0xFF800000> : vector<1xf32>
    %39 = vector.multi_reduction <maximumf>, %38, %cst_16 [1, 2] : vector<1x16x16xf32> to vector<1xf32>
    %40 = vector.shape_cast %39 : vector<1xf32> to vector<1x1x1xf32>
    %41 = vector.extract %40[0, 0, 0] : f32 from vector<1x1x1xf32>
    %42 = vector.broadcast %41 : f32 to vector<1x1xf32>
    %43 = tpu.iota {dimensions = array<i32: 1>} : vector<1x128xi32>
    %c0_i32 = arith.constant 0 : i32
    %44 = vector.broadcast %c0_i32 : i32 to vector<1x128xi32>
    %45 = arith.cmpi eq, %43, %44 : vector<1x128xi32>
    %cst_17 = arith.constant 0.000000e+00 : f32
    %46 = vector.shape_cast %16 : vector<1x1xf32> to vector<1x1xf32>
    %47 = vector.broadcast %46 : vector<1x1xf32> to vector<1x128xf32>
    %48 = vector.broadcast %cst_17 : f32 to vector<1x128xf32>
    %49 = arith.select %45, %47, %48 : vector<1x128xi1>, vector<1x128xf32>
    %c1_i32 = arith.constant 1 : i32
    %50 = vector.broadcast %c1_i32 : i32 to vector<1x128xi32>
    %51 = arith.cmpi eq, %43, %50 : vector<1x128xi32>
    %52 = vector.shape_cast %21 : vector<1x1xf32> to vector<1x1xf32>
    %53 = vector.broadcast %52 : vector<1x1xf32> to vector<1x128xf32>
    %54 = arith.select %51, %53, %49 : vector<1x128xi1>, vector<1x128xf32>
    %c2_i32 = arith.constant 2 : i32
    %55 = vector.broadcast %c2_i32 : i32 to vector<1x128xi32>
    %56 = arith.cmpi eq, %43, %55 : vector<1x128xi32>
    %57 = vector.shape_cast %27 : vector<1x1xf32> to vector<1x1xf32>
    %58 = vector.broadcast %57 : vector<1x1xf32> to vector<1x128xf32>
    %59 = arith.select %56, %58, %54 : vector<1x128xi1>, vector<1x128xf32>
    %c3_i32 = arith.constant 3 : i32
    %60 = vector.broadcast %c3_i32 : i32 to vector<1x128xi32>
    %61 = arith.cmpi eq, %43, %60 : vector<1x128xi32>
    %62 = vector.shape_cast %32 : vector<1x1xf32> to vector<1x1xf32>
    %63 = vector.broadcast %62 : vector<1x1xf32> to vector<1x128xf32>
    %64 = arith.select %61, %63, %59 : vector<1x128xi1>, vector<1x128xf32>
    %c4_i32 = arith.constant 4 : i32
    %65 = vector.broadcast %c4_i32 : i32 to vector<1x128xi32>
    %66 = arith.cmpi eq, %43, %65 : vector<1x128xi32>
    %67 = vector.shape_cast %37 : vector<1x1xf32> to vector<1x1xf32>
    %68 = vector.broadcast %67 : vector<1x1xf32> to vector<1x128xf32>
    %69 = arith.select %66, %68, %64 : vector<1x128xi1>, vector<1x128xf32>
    %c5_i32 = arith.constant 5 : i32
    %70 = vector.broadcast %c5_i32 : i32 to vector<1x128xi32>
    %71 = arith.cmpi eq, %43, %70 : vector<1x128xi32>
    %72 = vector.shape_cast %42 : vector<1x1xf32> to vector<1x1xf32>
    %73 = vector.broadcast %72 : vector<1x1xf32> to vector<1x128xf32>
    %74 = arith.select %71, %73, %69 : vector<1x128xi1>, vector<1x128xf32>
    %c0_18 = arith.constant 0 : index
    %c0_19 = arith.constant 0 : index
    %c0_20 = arith.constant 0 : index
    %75 = vector.load %arg5[%c0_18, %c0_19, %c0_20] : memref<1x1x128xf32, #tpu.memory_space<vmem>>, vector<1x1x128xf32>
    %76 = vector.shape_cast %75 : vector<1x1x128xf32> to vector<1x128xf32>
    %77 = vector.shape_cast %74 : vector<1x128xf32> to vector<1x1x128xf32>
    tpu.vector_store %arg5[%c0_18, %c0_19, %c0_20], %77 {strides = array<i32>} : memref<1x1x128xf32, #tpu.memory_space<vmem>>, vector<1x1x128xf32>,
    return
  }
  func.func @transform_0(%arg0: i32) -> (i32, i32, i32) {
    %c0_i32 = arith.constant 0 : i32
    %c0_i32_0 = arith.constant 0 : i32
    %c0_i32_1 = arith.constant 0 : i32
    return %arg0, %c0_i32, %c0_i32_0 : i32, i32, i32
  }
  func.func @transform_1(%arg0: i32) -> (i32, i32, i32) {
    %c0_i32 = arith.constant 0 : i32
    %c0_i32_0 = arith.constant 0 : i32
    %c0_i32_1 = arith.constant 0 : i32
    return %arg0, %c0_i32, %c0_i32_0 : i32, i32, i32
  }
  func.func @transform_2(%arg0: i32) -> (i32, i32) {
    %c0_i32 = arith.constant 0 : i32
    %c0_i32_0 = arith.constant 0 : i32
    %c0_i32_1 = arith.constant 0 : i32
    return %c0_i32, %c0_i32_0 : i32, i32
  }
  func.func @transform_3(%arg0: i32) -> (i32, i32) {
    %c0_i32 = arith.constant 0 : i32
    %c0_i32_0 = arith.constant 0 : i32
    %c0_i32_1 = arith.constant 0 : i32
    return %c0_i32, %c0_i32_0 : i32, i32
  }
  func.func @transform_4(%arg0: i32) -> (i32, i32, i32) {
    %c0_i32 = arith.constant 0 : i32
    %c0_i32_0 = arith.constant 0 : i32
    %c0_i32_1 = arith.constant 0 : i32
    return %arg0, %c0_i32, %c0_i32_0 : i32, i32, i32
  }
}

</mosaic_0001>

<llo_original>
// kernel: soft_iou.1
$region0: #{soft_iou.1}
  #allocation0 [shape = 'u32[]', space=smem, size = 0x4, offset = 0x4, fixed_abs, tag = 'smem constant byte address 0x4 - core index']
  #allocation1 [shape = 'u32[72,128]{1,0:T(1,128)}', space=vmem, size = 0x9000, scoped, tag = 'internal scratch']
  %s0 = inlined_call_operand.hbm [shape: f32[2,16,16], index: 0, kind: input, shape index: {}]
  %s1 = inlined_call_operand.hbm [shape: f32[2,16,16], index: 1, kind: input, shape index: {}]
  %s2 = inlined_call_operand.hbm [shape: f32[16,16], index: 2, kind: input, shape index: {}]
  %s3 = inlined_call_operand.hbm [shape: f32[16,16], index: 3, kind: input, shape index: {}]
  %s4 = inlined_call_operand.vmem [shape: f32[2,1,128], index: 4, kind: output, shape index: {}]
  %s5 = sld [smem:[#allocation0]]
  $region65: #{soft_iou.1} parent=0
    _
  %s7 = ssub.s32 1, %s5
  %s8 = scalar_select 0, %s7, %s5
  $region1: #{soft_iou.1} parent=0
    #allocation2 [shape = 'u8[16384]{0}', space=vmem, size = 0x4000, scoped, tag = 'input window, operand 0']
    #allocation3 [shape = 's32[2]{0}', space=sflag, size = 0x8, scoped, tag = 'scoped memory for soft_iou.1']
    #allocation4 [shape = 'u8[16384]{0}', space=vmem, size = 0x4000, scoped, tag = 'input window, operand 1']
    #allocation5 [shape = 's32[2]{0}', space=sflag, size = 0x8, scoped, tag = 'scoped memory for soft_iou.1']
    #allocation6 [shape = 'u8[8192]{0}', space=vmem, size = 0x2000, scoped, tag = 'input window, operand 2, single buffered']
    #allocation7 [shape = 'u8[8192]{0}', space=vmem, size = 0x2000, scoped, tag = 'input window, operand 3, single buffered']
    #allocation8 [shape = 's32[1]{0}', space=sflag, size = 0x4, scoped, tag = 'scoped memory for soft_iou.1']
    %9 = vsyncpa [#allocation3], 0
    %s10 = scalar_lea.sflag [#allocation3], 1
    %11 = vsyncpa %s10, 0
    %12 = vsyncpa [#allocation5], 0
    %s13 = scalar_lea.sflag [#allocation5], 1
    %14 = vsyncpa %s13, 0
    %15 = vsyncpa [#allocation8], 0
    loop: start=0, step=1, limit=4
    $region2: #{soft_iou.1} parent=1 // loop_pre_header
      _
    $region3: #{soft_iou.1} parent=1 // loop_header
      %s17 = sphi 0, %s21
      %p18 = scmp.ge.s32.totalorder %s17, 4
      %s27 = sphi 0, %s29
      %s30 = sphi 0, %s27
      %s31 = sphi 0, %s30
      %s47 = sphi 0, %s31
      %s53 = sphi 0, %s55
      %s56 = sphi 0, %s53
      %s57 = sphi 0, %s56
      %s73 = sphi 0, %s57
      %s77 = sphi 0, %s77
      %s79 = sphi 0, %s77
      %s80 = sphi 0, %s79
      %s94 = sphi 0, %s80
      %s98 = sphi 0, %s98
      %s100 = sphi 0, %s98
      %s101 = sphi 0, %s100
      %s115 = sphi 0, %s101
      %s121 = sphi 0, %s123
      %s124 = sphi 0, %s121
      %s125 = sphi 0, %s124
      %s141 = sphi 0, %s125
    $region4: #{soft_iou.1} parent=1 // loop_header_branch
      %20 = sbr.rel (%p18) target = $region8
    $region5: #{soft_iou.1} parent=1 // loop_body
      %s22 = ssub.s32 %s17, 1
      %s23 = ssub.s32 %s17, 2
      %s24 = sadd.s32 %s17, 1
      %s25 = ssub.s32 %s17, %s24
      %p26 = scmp.eq.s32.totalorder %s25, 0
      %s28 = sadd.s32 %s27, 1
      %s29 = scalar_select %p26, %s27, %s28
      %p32 = pneg %p26
      %p33 = scmp.eq.s32.totalorder %s17, 1
      %p34 = por %p32, %p33
      %p35 = scmp.ne.s32.totalorder %s27, %s30
      %p36 = scmp.eq.s32.totalorder %s17, 0
      %p37 = por %p35, %p36
      %p38 = scmp.ne.s32.totalorder %s27, %s30
      %p39 = scmp.eq.s32.totalorder %s22, 1
      %p40 = por %p38, %p39
      %p41 = scmp.ne.s32.totalorder %s30, %s31
      %p42 = scmp.eq.s32.totalorder %s22, 0
      %p43 = por %p41, %p42
      %p44 = scmp.ne.s32.totalorder %s30, %s31
      %p45 = scmp.eq.s32.totalorder %s23, 1
      %p46 = por %p44, %p45
      %p48 = scmp.ne.s32.totalorder %s31, %s47
      %p49 = scmp.eq.s32.totalorder %s23, 0
      %p50 = por %p48, %p49
      %s51 = ssub.s32 %s17, %s24
      %p52 = scmp.eq.s32.totalorder %s51, 0
      %s54 = sadd.s32 %s53, 1
      %s55 = scalar_select %p52, %s53, %s54
      %p58 = pneg %p52
      %p59 = scmp.eq.s32.totalorder %s17, 1
      %p60 = por %p58, %p59
      %p61 = scmp.ne.s32.totalorder %s53, %s56
      %p62 = scmp.eq.s32.totalorder %s17, 0
      %p63 = por %p61, %p62
      %p64 = scmp.ne.s32.totalorder %s53, %s56
      %p65 = scmp.eq.s32.totalorder %s22, 1
      %p66 = por %p64, %p65
      %p67 = scmp.ne.s32.totalorder %s56, %s57
      %p68 = scmp.eq.s32.totalorder %s22, 0
      %p69 = por %p67, %p68
      %p70 = scmp.ne.s32.totalorder %s56, %s57
      %p71 = scmp.eq.s32.totalorder %s23, 1
      %p72 = por %p70, %p71
      %p74 = scmp.ne.s32.totalorder %s57, %s73
      %p75 = scmp.eq.s32.totalorder %s23, 0
      %p76 = por %p74, %p75
      %s78 = sadd.s32 %s77, 1
      %p81 = scmp.eq.s32.totalorder %s17, 1
      %p82 = scmp.ne.s32.totalorder %s77, %s79
      %p83 = scmp.eq.s32.totalorder %s17, 0
      %p84 = por %p82, %p83
      %p85 = scmp.ne.s32.totalorder %s77, %s79
      %p86 = scmp.eq.s32.totalorder %s22, 1
      %p87 = por %p85, %p86
      %p88 = scmp.ne.s32.totalorder %s79, %s80
      %p89 = scmp.eq.s32.totalorder %s22, 0
      %p90 = por %p88, %p89
      %p91 = scmp.ne.s32.totalorder %s79, %s80
      %p92 = scmp.eq.s32.totalorder %s23, 1
      %p93 = por %p91, %p92
      %p95 = scmp.ne.s32.totalorder %s80, %s94
      %p96 = scmp.eq.s32.totalorder %s23, 0
      %p97 = por %p95, %p96
      %s99 = sadd.s32 %s98, 1
      %p102 = scmp.eq.s32.totalorder %s17, 1
      %p103 = scmp.ne.s32.totalorder %s98, %s100
      %p104 = scmp.eq.s32.totalorder %s17, 0
      %p105 = por %p103, %p104
      %p106 = scmp.ne.s32.totalorder %s98, %s100
      %p107 = scmp.eq.s32.totalorder %s22, 1
      %p108 = por %p106, %p107
      %p109 = scmp.ne.s32.totalorder %s100, %s101
      %p110 = scmp.eq.s32.totalorder %s22, 0
      %p111 = por %p109, %p110
      %p112 = scmp.ne.s32.totalorder %s100, %s101
      %p113 = scmp.eq.s32.totalorder %s23, 1
      %p114 = por %p112, %p113
      %p116 = scmp.ne.s32.totalorder %s101, %s115
      %p117 = scmp.eq.s32.totalorder %s23, 0
      %p118 = por %p116, %p117
      %s119 = ssub.s32 %s17, %s24
      %p120 = scmp.eq.s32.totalorder %s119, 0
      %s122 = sadd.s32 %s121, 1
      %s123 = scalar_select %p120, %s121, %s122
      %p126 = pneg %p120
      %p127 = scmp.eq.s32.totalorder %s17, 1
      %p128 = por %p126, %p127
      %p129 = scmp.ne.s32.totalorder %s121, %s124
      %p130 = scmp.eq.s32.totalorder %s17, 0
      %p131 = por %p129, %p130
      %p132 = scmp.ne.s32.totalorder %s121, %s124
      %p133 = scmp.eq.s32.totalorder %s22, 1
      %p134 = por %p132, %p133
      %p135 = scmp.ne.s32.totalorder %s124, %s125
      %p136 = scmp.eq.s32.totalorder %s22, 0
      %p137 = por %p135, %p136
      %p138 = scmp.ne.s32.totalorder %s124, %s125
      %p139 = scmp.eq.s32.totalorder %s23, 1
      %p140 = por %p138, %p139
      %p142 = scmp.ne.s32.totalorder %s125, %s141
      %p143 = scmp.eq.s32.totalorder %s23, 0
      %p144 = por %p142, %p143
      %p145 = scmp.le.s32.totalorder 1, %s17
      %p146 = scmp.lt.s32.totalorder %s17, 3
      %p147 = pnand %p145, %p146
      %p148 = pneg %p147
      // Predicated region
      $region9: #{soft_iou.1} parent=5 // pred_check
        _
      $region10: #{soft_iou.1} parent=5 // pred_check_branch
        %150 = sbr.rel (%p147) target = $region12
      $region11: #{soft_iou.1} parent=5 // pred_region
        %s151 = ssub.s32 %s17, 1
        // Predicated region
        $region13: #{soft_iou.1} parent=11 // pred_check
          %p152 = pneg %p90
        $region14: #{soft_iou.1} parent=11 // pred_check_branch
          %154 = sbr.rel (%p152) target = $region16
        $region15: #{soft_iou.1} parent=11 // pred_region
          %156 = vsyncadd [#allocation5], 0
          %s157 = sshll.u32 %s2, 4
          %s158 = int_to_ptr.hbm [resolvable:$true] %s157
          %s159 = sshll.u32 [#allocation6], 4
          %s160 = int_to_ptr.vmem [resolvable:$true] %s159
          %165 = dma.hbm_to_vmem [thread:$0]  %s158, 256, %s160, [#allocation5], 128, 128, 8
        $region16: #{soft_iou.1} parent=11 // pred_fallthru
          _
        // Predicated region
        $region17: #{soft_iou.1} parent=11 // pred_check
          %p166 = pneg %p111
        $region18: #{soft_iou.1} parent=11 // pred_check_branch
          %168 = sbr.rel (%p166) target = $region20
        $region19: #{soft_iou.1} parent=11 // pred_region
          %170 = vsyncadd [#allocation8], 0
          %s171 = sshll.u32 %s3, 4
          %s172 = int_to_ptr.hbm [resolvable:$true] %s171
          %s173 = sshll.u32 [#allocation7], 4
          %s174 = int_to_ptr.vmem [resolvable:$true] %s173
          %179 = dma.hbm_to_vmem [thread:$0]  %s172, 256, %s174, [#allocation8], 128, 128, 8
        $region20: #{soft_iou.1} parent=11 // pred_fallthru
          _
      $region12: #{soft_iou.1} parent=5 // pred_fallthru
        _
      %p180 = scmp.lt.s32.totalorder %s17, 2
      // Predicated region
      $region21: #{soft_iou.1} parent=5 // pred_check
        %p181 = pneg %p180
      $region22: #{soft_iou.1} parent=5 // pred_check_branch
        %183 = sbr.rel (%p181) target = $region24
      $region23: #{soft_iou.1} parent=5 // pred_region
        // Predicated region
        $region25: #{soft_iou.1} parent=23 // pred_check
          %p184 = pneg %p37
        $region26: #{soft_iou.1} parent=23 // pred_check_branch
          %186 = sbr.rel (%p184) target = $region28
        $region27: #{soft_iou.1} parent=23 // pred_region
          %s187 = sand.u32 %s27, 1
          %s188 = scalar_lea.sflag [#allocation3], %s187
          %s189 = sand.u32 %s27, 1
          %s190 = smul.addr %s189, 16
          %s191 = scalar_lea.vmem [#allocation2], %s190
          %193 = vsyncadd %s188, 0
          %s194 = smul.addr %s17, 2
          %s195 = smul.addr %s194, 8
          %s196 = scalar_lea.hbm %s0, %s195
          %s197 = sshll.u32 %s196, 4
          %s198 = int_to_ptr.hbm [resolvable:$true] %s197
          %s199 = sshll.u32 %s191, 4
          %s200 = int_to_ptr.vmem [resolvable:$true] %s199
          %205 = dma.hbm_to_vmem [thread:$0]  %s198, 256, %s200, %s188, 128, 128, 8
        $region28: #{soft_iou.1} parent=23 // pred_fallthru
          _
        // Predicated region
        $region29: #{soft_iou.1} parent=23 // pred_check
          %p206 = pneg %p63
        $region30: #{soft_iou.1} parent=23 // pred_check_branch
          %208 = sbr.rel (%p206) target = $region32
        $region31: #{soft_iou.1} parent=23 // pred_region
          %s209 = sand.u32 %s17, 1
          %s210 = scalar_lea.sflag [#allocation5], %s209
          %s211 = sand.u32 %s53, 1
          %s212 = smul.addr %s211, 16
          %s213 = scalar_lea.vmem [#allocation4], %s212
          %215 = vsyncadd %s210, 0
          %s216 = smul.addr %s17, 2
          %s217 = smul.addr %s216, 8
          %s218 = scalar_lea.hbm %s1, %s217
          %s219 = sshll.u32 %s218, 4
          %s220 = int_to_ptr.hbm [resolvable:$true] %s219
          %s221 = sshll.u32 %s213, 4
          %s222 = int_to_ptr.vmem [resolvable:$true] %s221
          %227 = dma.hbm_to_vmem [thread:$0]  %s220, 256, %s222, %s210, 128, 128, 8
        $region32: #{soft_iou.1} parent=23 // pred_fallthru
          _
      $region24: #{soft_iou.1} parent=5 // pred_fallthru
        _
      %p228 = scmp.le.s32.totalorder 1, %s17
      %p229 = scmp.lt.s32.totalorder %s17, 3
      %p230 = pnand %p228, %p229
      %p231 = pneg %p230
      // Predicated region
      $region33: #{soft_iou.1} parent=5 // pred_check
        _
      $region34: #{soft_iou.1} parent=5 // pred_check_branch
        %233 = sbr.rel (%p230) target = $region36
      $region35: #{soft_iou.1} parent=5 // pred_region
        %s234 = ssub.s32 %s17, 1
        %s235 = sand.u32 %s30, 1
        %s236 = scalar_lea.sflag [#allocation3], %s235
        %s237 = sand.u32 %s30, 1
        %s238 = smul.addr %s237, 16
        %s239 = scalar_lea.vmem [#allocation2], %s238
        // Predicated region
        $region37: #{soft_iou.1} parent=35 // pred_check
          %p240 = pneg %p43
        $region38: #{soft_iou.1} parent=35 // pred_check_branch
          %242 = sbr.rel (%p240) target = $region40
        $region39: #{soft_iou.1} parent=35 // pred_region
          %244 = dma.done %s236, 256
        $region40: #{soft_iou.1} parent=35 // pred_fallthru
          _
        %s245 = sand.u32 %s22, 1
        %s246 = scalar_lea.sflag [#allocation5], %s245
        %s247 = sand.u32 %s56, 1
        %s248 = smul.addr %s247, 16
        %s249 = scalar_lea.vmem [#allocation4], %s248
        // Predicated region
        $region41: #{soft_iou.1} parent=35 // pred_check
          %p250 = pneg %p69
        $region42: #{soft_iou.1} parent=35 // pred_check_branch
          %252 = sbr.rel (%p250) target = $region44
        $region43: #{soft_iou.1} parent=35 // pred_region
          %254 = dma.done %s246, 256
        $region44: #{soft_iou.1} parent=35 // pred_fallthru
          _
        // Predicated region
        $region45: #{soft_iou.1} parent=35 // pred_check
          %p255 = pneg %p90
        $region46: #{soft_iou.1} parent=35 // pred_check_branch
          %257 = sbr.rel (%p255) target = $region48
        $region47: #{soft_iou.1} parent=35 // pred_region
          %259 = dma.done [#allocation5], 256
        $region48: #{soft_iou.1} parent=35 // pred_fallthru
          _
        // Predicated region
        $region49: #{soft_iou.1} parent=35 // pred_check
          %p260 = pneg %p111
        $region50: #{soft_iou.1} parent=35 // pred_check_branch
          %262 = sbr.rel (%p260) target = $region52
        $region51: #{soft_iou.1} parent=35 // pred_region
          %264 = dma.done [#allocation8], 256
        $region52: #{soft_iou.1} parent=35 // pred_fallthru
          _
        %s265 = sand.u32 %s30, 1
        %s266 = scalar_lea.sflag [#allocation3], %s265
        %s267 = sand.u32 %s30, 1
        %s268 = smul.addr %s267, 16
        %s269 = scalar_lea.vmem [#allocation2], %s268
        %p270 = pneg %p43
        %p271 = pneg %p40
        %s272 = sand.u32 %s22, 1
        %s273 = scalar_lea.sflag [#allocation5], %s272
        %s274 = sand.u32 %s56, 1
        %s275 = smul.addr %s274, 16
        %s276 = scalar_lea.vmem [#allocation4], %s275
        %p277 = pneg %p69
        %p278 = pneg %p66
        %p279 = pneg %p90
        %p280 = pneg %p87
        %p281 = pneg %p111
        %p282 = pneg %p108
        %p283 = pneg %p137
        %p284 = pneg %p134
        %p285 = scmp.lt.s32.totalorder %s22, 1
        %s286 = scalar_select %p285, %s22, 1
        %s287 = scalar_lea.vmem %s4, %s286
        %p288 = scmp.lt.s32.totalorder %s22, 1
        %s289 = scalar_select %p288, %s22, 1
        %s290 = scalar_lea.vmem %s4, %s289
        %v291 = vld [vmem:[%s239] sm:$0xff]
        %v292 = vld [vmem:[%s239 + $0x8] sm:$0xff]
        %v293 = vld [vmem:[%s249] sm:$0xff]
        %v294 = vld [vmem:[%s249 + $0x8] sm:$0xff]
        %v295 = vld [vmem:[#allocation6] sm:$0xff]
        %v296 = vld [vmem:[#allocation6 + $0x8] sm:$0xff]
        %vm297 = vcmask 130048
        %v299 = vsel %vm297, %v295, 0
        %v302 = vsel %vm297, %v296, 0
        %304 = vmatpush.msra.mxu0 0.0
        %305 = vmatpush.msra.mxu0 0.0
        %306 = vmatpush.msra.mxu0 0.0
        %307 = vmatpush.msra.mxu0 0.0
        %308 = vmatpush.msra.mxu0 0.0
        %309 = vmatpush.msra.mxu0 0.0
        %310 = vmatpush.msra.mxu0 0.0
        %311 = vmatpush.msra.mxu0 0.0
        %312 = vmatpush.msra.mxu0 0.0
        %313 = vmatpush.msra.mxu0 0.0
        %314 = vmatpush.msra.mxu0 0.0
        %315 = vmatpush.msra.mxu0 0.0
        %316 = vmatpush.msra.mxu0 0.0
        %317 = vmatpush.msra.mxu0 0.0
        %318 = vmatpush.msra.mxu0 %v292
        %319 = vmatpush.msra.mxu0 %v291
        %320 = vmatmul.f32.gmra.mxu0 %v299
        %v321 = vpop.f32.mrf.mxu0
        %v322 = vadd.f32 0.0, %v321
        %323 = vmatmul.f32.gmra.mxu0 %v302
        %v324 = vpop.f32.mrf.mxu0
        %v325 = vadd.f32 0.0, %v324
        %326 = vdwg.mxu0
        %v327 = vld [vmem:[#allocation7] sm:$0xff]
        %v328 = vld [vmem:[#allocation7 + $0x8] sm:$0xff]
        %v330 = vsel %vm297, %v322, 0
        %v333 = vsel %vm297, %v325, 0
        %335 = vmatpush.msra.mxu0 0.0
        %336 = vmatpush.msra.mxu0 0.0
        %337 = vmatpush.msra.mxu0 0.0
        %338 = vmatpush.msra.mxu0 0.0
        %339 = vmatpush.msra.mxu0 0.0
        %340 = vmatpush.msra.mxu0 0.0
        %341 = vmatpush.msra.mxu0 0.0
        %342 = vmatpush.msra.mxu0 0.0
        %343 = vmatpush.msra.mxu0 0.0
        %344 = vmatpush.msra.mxu0 0.0
        %345 = vmatpush.msra.mxu0 0.0
        %346 = vmatpush.msra.mxu0 0.0
        %347 = vmatpush.msra.mxu0 0.0
        %348 = vmatpush.msra.mxu0 0.0
        %349 = vmatpush.msra.mxu0 %v328
        %350 = vmatpush.msra.mxu0 %v327
        %351 = vmatmul.f32.gmra.mxu0 %v330
        %v352 = vpop.f32.mrf.mxu0
        %v353 = vadd.f32 0.0, %v352
        %354 = vmatmul.f32.gmra.mxu0 %v333
        %v355 = vpop.f32.mrf.mxu0
        %v356 = vadd.f32 0.0, %v355
        %357 = vdwg.mxu0
        %vm358 = vcmp.eq.f32.partialorder %v293, 1.0
        %vm359 = vcmp.eq.f32.partialorder %v294, 1.0
        %v360 = vsel %vm358, 1, 0
        %v361 = vsel %vm359, 1, 0
        %v362 = vcvt.s32.f32 %v360
        %v363 = vcvt.s32.f32 %v361
        %v364 = vsel %vm297, %v291, 0.0
        %v365 = vsel %vm297, %v292, 0.0
        %v366 = vadd.f32 %v364, %v365
        %367 = vadd.xlane.f32.xlu0 %v366
        %v368 = vpop.xlane.xlu0 %367
        %v369 = vrot.slane %v368, 4
        %v370 = vadd.f32 %v368, %v369
        %v371 = vrot.slane %v370, 2
        %v372 = vadd.f32 %v370, %v371
        %v373 = vrot.slane %v372, 1
        %v374 = vadd.f32 %v372, %v373
        %s375 = vtos %v374
        %v376 = vsel %vm297, %v293, 0.0
        %v377 = vsel %vm297, %v294, 0.0
        %v378 = vadd.f32 %v376, %v377
        %379 = vadd.xlane.f32.xlu0 %v378
        %v380 = vpop.xlane.xlu0 %379
        %v381 = vrot.slane %v380, 4
        %v382 = vadd.f32 %v380, %v381
        %v383 = vrot.slane %v382, 2
        %v384 = vadd.f32 %v382, %v383
        %v385 = vrot.slane %v384, 1
        %v386 = vadd.f32 %v384, %v385
        %s387 = vtos %v386
        %v388 = vmul.f32 %v353, %v362
        %v389 = vmul.f32 %v356, %v363
        %v390 = vsel %vm297, %v388, 0.0
        %v391 = vsel %vm297, %v389, 0.0
        %v392 = vadd.f32 %v390, %v391
        %393 = vadd.xlane.f32.xlu0 %v392
        %v394 = vpop.xlane.xlu0 %393
        %v395 = vrot.slane %v394, 4
        %v396 = vadd.f32 %v394, %v395
        %v397 = vrot.slane %v396, 2
        %v398 = vadd.f32 %v396, %v397
        %v399 = vrot.slane %v398, 1
        %v400 = vadd.f32 %v398, %v399
        %s401 = vtos %v400
        %v402 = vsel %vm297, %v362, 0.0
        %v403 = vsel %vm297, %v363, 0.0
        %v404 = vadd.f32 %v402, %v403
        %405 = vadd.xlane.f32.xlu0 %v404
        %v406 = vpop.xlane.xlu0 %405
        %v407 = vrot.slane %v406, 4
        %v408 = vadd.f32 %v406, %v407
        %v409 = vrot.slane %v408, 2
        %v410 = vadd.f32 %v408, %v409
        %v411 = vrot.slane %v410, 1
        %v412 = vadd.f32 %v410, %v411
        %s413 = vtos %v412
        %v414 = vsel %vm297, %v353, inf
        %v415 = vsel %vm297, %v356, inf
        %v416 = vmin.f32 %v414, %v415
        %417 = vmin.xlane.f32.xlu0 %v416
        %v418 = vpop.xlane.xlu0 %417
        %v419 = vrot.slane %v418, 4
        %v420 = vmin.f32 %v418, %v419
        %v421 = vrot.slane %v420, 2
        %v422 = vmin.f32 %v420, %v421
        %v423 = vrot.slane %v422, 1
        %v424 = vmin.f32 %v422, %v423
        %s425 = vtos %v424
        %v426 = vsel %vm297, %v353, -inf
        %v427 = vsel %vm297, %v356, -inf
        %v428 = vmax.f32 %v426, %v427
        %429 = vmax.xlane.f32.xlu0 %v428
        %v430 = vpop.xlane.xlu0 %429
        %v431 = vrot.slane %v430, 4
        %v432 = vmax.f32 %v430, %v431
        %v433 = vrot.slane %v432, 2
        %v434 = vmax.f32 %v432, %v433
        %v435 = vrot.slane %v434, 1
        %v436 = vmax.f32 %v434, %v435
        %s437 = vtos %v436
        %v438 = vlaneseq
        %v439 = vand.u32 %v438, 127
        %vm440 = vcmp.eq.s32.totalorder %v439, 0
        %v441 = vstv %s375
        %v442 = vsel %vm440, %v441, 0.0
        %vm443 = vcmp.eq.s32.totalorder %v439, 1
        %v444 = vstv %s387
        %v445 = vsel %vm443, %v444, %v442
        %vm446 = vcmp.eq.s32.totalorder %v439, 2
        %v447 = vstv %s401
        %v448 = vsel %vm446, %v447, %v445
        %vm449 = vcmp.eq.s32.totalorder %v439, 3
        %v450 = vstv %s413
        %v451 = vsel %vm449, %v450, %v448
        %vm452 = vcmp.eq.s32.totalorder %v439, 4
        %v453 = vstv %s425
        %v454 = vsel %vm452, %v453, %v451
        %vm455 = vcmp.eq.s32.totalorder %v439, 5
        %v456 = vstv %s437
        %v457 = vsel %vm455, %v456, %v454
        %458 = vst [vmem:[%s290] sm:$0x1] %v457
        %p459 = scmp.lt.s32.totalorder %s22, 1
        %s460 = scalar_select %p459, %s22, 1
        %s461 = scalar_lea.vmem %s4, %s460
        // Predicated region
        $region53: #{soft_iou.1} parent=35 // pred_check
          %p462 = pneg %p134
        $region54: #{soft_iou.1} parent=35 // pred_check_branch
          %464 = sbr.rel (%p462) target = $region56
        $region55: #{soft_iou.1} parent=35 // pred_region
          _
        $region56: #{soft_iou.1} parent=35 // pred_fallthru
          _
      $region36: #{soft_iou.1} parent=5 // pred_fallthru
        _
      %p465 = scmp.le.s32.totalorder 2, %s17
      // Predicated region
      $region57: #{soft_iou.1} parent=5 // pred_check
        %p466 = pneg %p465
      $region58: #{soft_iou.1} parent=5 // pred_check_branch
        %468 = sbr.rel (%p466) target = $region60
      $region59: #{soft_iou.1} parent=5 // pred_region
        %s469 = ssub.s32 %s17, 2
        // Predicated region
        $region61: #{soft_iou.1} parent=59 // pred_check
          %p470 = pneg %p140
        $region62: #{soft_iou.1} parent=59 // pred_check_branch
          %472 = sbr.rel (%p470) target = $region64
        $region63: #{soft_iou.1} parent=59 // pred_region
          %p473 = scmp.lt.s32.totalorder %s23, 1
          %s474 = scalar_select %p473, %s23, 1
          %s475 = scalar_lea.vmem %s4, %s474
        $region64: #{soft_iou.1} parent=59 // pred_fallthru
          _
      $region60: #{soft_iou.1} parent=5 // pred_fallthru
        _
    $region6: #{soft_iou.1} parent=1 // loop_footer
      %s21 = sadd.s32 1, %s17
    $region7: #{soft_iou.1} parent=1 // loop_footer_branch
      %16 = sbr.rel target = $region3
    $region8: #{soft_iou.1} parent=1 // loop_exit
      _
    %476 = vsyncpa [#allocation3], 1
    %s477 = scalar_lea.sflag [#allocation3], 1
    %478 = vsyncpa %s477, 1
    %479 = vsyncpa [#allocation5], 1
    %s480 = scalar_lea.sflag [#allocation5], 1
    %481 = vsyncpa %s480, 1
    %482 = vsyncpa [#allocation8], 1

</llo_original>
